<compile_context>
chip_gen: v7x
topology: tpu7x:2x2x1
jax: 0.10.0
libtpu: 0.0.40
codegen_flags: <defaults>
</compile_context>

<pallas_src>
import functools

import numpy as np
import jax
import jax.numpy as jnp
from jax.experimental import pallas as pl
from jax.experimental.pallas import tpu as pltpu


# ------------------------------- the kernel -------------------------------
def _nape_kernel(param_ref, pselT_ref, coef_ref, out_ref, *, b):
    """One grid step == S_BLK = lanes // b forward calls.

    param_ref : (N+8, D+1) shared slab: [:N,:D]=P, [:N,D]=deg_vec, [N,:D]=W_d
    pselT_ref : (D, lanes)  P rows of the selected nodes, transposed; lane
                c = b_idx * S_BLK + s_local (b-major, step-minor)
    coef_ref  : (2, N, lanes) contrastive coefficients (0=adjacency, 1=deg-dist),
                same lane layout; per column, loss = sum_n logsig(H[n,c])*coef[n,c]
    out_ref   : (8, 128)  rows 0/1/2, lanes [0:S_BLK) = L_adj / L_deg_dist / L_deg
    """
    n = coef_ref.shape[1]
    d, lanes = pselT_ref.shape
    s_blk = lanes // b

    par = param_ref[...]
    # TODO(synk): `Sigmoid_alt` is not defined in the provided source; we assume the
    # signed sigmoid 2*sigmoid(x) - 1 == tanh(x/2) (a single EUP op, no f32 divide).
    z = jnp.tanh(0.5 * par[0:n, 0:d])                       # (n, d)
    zsel_t = jnp.tanh(0.5 * pselT_ref[...])                 # (d, lanes)
    deg = par[0:n, d:d + 1]                                 # (n, 1)
    w_d = par[n:n + 1, 0:d]                                 # (1, d)

    # ---- degree loss: MSE(Z @ W_d, deg_vec) (independent of the selection) ----
    deg_prime = jnp.sum(z * w_d, axis=1, keepdims=True)     # (n, 1)
    diff = deg_prime - deg
    l_deg = jnp.sum(jnp.sum(diff * diff, axis=1, keepdims=True),
                    axis=0, keepdims=True) * (1.0 / n)      # (1, 1)

    # ---- lane-dense hamming distances: H[n, c] = sum_k |Z[n,k] - Zsel[c,k]| ----
    h = jnp.zeros((n, lanes), jnp.float32)
    for k in range(d):                                      # d is small & static
        h = h + jnp.abs(z[:, k:k + 1] - zsel_t[k:k + 1, :])  # full 128-lane VPU op

    # one log-sigmoid pass over the whole tile (h >= 0, so exp(-h) <= 1: safe)
    ls = -jnp.log(1.0 + jnp.exp(-h))                        # (n, lanes)

    # weighted sublane reduces: per-column contribution of each loss
    cf = coef_ref[...]                                      # (2, n, lanes)
    col_adj = jnp.sum(ls * cf[0], axis=0, keepdims=True)    # (1, lanes)
    col_dd = jnp.sum(ls * cf[1], axis=0, keepdims=True)     # (1, lanes)

    # segment-sum the b groups of s_blk lanes (XLU rolls; since b*s_blk == lanes the
    # cyclic coset sum is the same for either roll direction).
    l_adj = col_adj
    l_dd = col_dd
    for j in range(1, b):
        l_adj = l_adj + pltpu.roll(col_adj, shift=j * s_blk, axis=1)
        l_dd = l_dd + pltpu.roll(col_dd, shift=j * s_blk, axis=1)

    # pack: rows 0/1/2 hold the per-call losses in lanes [0, s_blk); single
    # unmasked lane-dense store per block of S_BLK forward calls.
    row = jax.lax.broadcasted_iota(jnp.int32, out_ref.shape, 0)
    lane = jax.lax.broadcasted_iota(jnp.int32, out_ref.shape, 1)
    valid = lane < s_blk
    out = jnp.where(jnp.logical_and(row == 0, valid), l_adj, 0.0)
    out = jnp.where(jnp.logical_and(row == 1, valid), l_dd, out)
    out = jnp.where(jnp.logical_and(row == 2, valid), l_deg, out)
    out_ref[...] = out.astype(jnp.float32)


# ------------------------------ wrapper glue ------------------------------
def _coef_matrix(pos_idx, neg_idx, n):
    """coef[s,b,n] = (K/U_sb)*neg_count[n] - pos_count[s,b,n]/U_sb,
    with U_sb = len(set(pos)) (exact w.r.t. duplicate positives), so each loss is a
    single weighted sum  L = sum_n logsig(H[n]) * coef[n]."""
    cnt = jax.nn.one_hot(pos_idx, n, dtype=jnp.float32).sum(axis=2)            # (S, B, N)
    uniq = jnp.maximum(jnp.sum(cnt > 0, axis=2).astype(jnp.float32), 1.0)      # (S, B)
    k = float(pos_idx.shape[2])                                                # len(pos) w/ dups
    neg_cnt = jax.nn.one_hot(neg_idx, n, dtype=jnp.float32).sum(axis=0)        # (N,)
    return (k / uniq)[:, :, None] * neg_cnt[None, None, :] - cnt / uniq[:, :, None]


@jax.jit
def position_encode_forward_batched(P, W_d, deg_vec, nodes, pos_neigh, neg_samples,
                                    deg_pos_neigh, deg_neg_samples):
    """S forward calls, S_BLK=128//B of them per grid step.

    nodes: (S, B) int, pos_neigh: (S, B, Kp), deg_pos_neigh: (S, B, Kd);
    neg_samples / deg_neg_samples are shared (module attributes).
    Returns (L_adj, L_deg_dist, L_deg), each of shape (S,).
    For best v7x occupancy use S >= 2*S_BLK so the grid has >= 2 steps."""
    P = jnp.asarray(P, jnp.float32)
    W_d = jnp.asarray(W_d, jnp.float32)
    deg_vec = jnp.asarray(deg_vec, jnp.float32)
    nodes = jnp.asarray(nodes, jnp.int32)
    pos_neigh = jnp.asarray(pos_neigh, jnp.int32)
    neg_samples = jnp.asarray(neg_samples, jnp.int32)
    deg_pos_neigh = jnp.asarray(deg_pos_neigh, jnp.int32)
    deg_neg_samples = jnp.asarray(deg_neg_samples, jnp.int32)

    n, d = P.shape
    s_calls, b = nodes.shape
    assert 128 % b == 0, "TODO(synk): pad B so that B divides 128"
    s_blk = 128 // b                      # forward calls per grid step
    lanes = s_blk * b                     # == 128: full-lane tiles
    num_blocks = pl.cdiv(s_calls, s_blk)
    s_pad = num_blocks * s_blk

    def pad0(x):
        if x.shape[0] == s_pad:
            return x
        fill = jnp.zeros((s_pad - x.shape[0],) + x.shape[1:], x.dtype)
        return jnp.concatenate([x, fill], axis=0)

    nodes_p = pad0(nodes)
    pos_p = pad0(pos_neigh)
    dpos_p = pad0(deg_pos_neigh)

    # ---- lane-aligned operand slabs (HBM lane order: block, b, s_local) ----
    p_sel = P[nodes_p.reshape(-1)]                                   # (s_pad*b, d)
    p_sel = p_sel.reshape(num_blocks, s_blk, b, d)
    psel_t = jnp.transpose(p_sel, (3, 0, 2, 1)).reshape(d, num_blocks * lanes)

    coef = jnp.stack([_coef_matrix(pos_p, neg_samples, n),
                      _coef_matrix(dpos_p, deg_neg_samples, n)], axis=0)  # (2,s_pad,b,n)
    coef = coef.reshape(2, num_blocks, s_blk, b, n)
    coef = jnp.transpose(coef, (0, 4, 1, 3, 2)).reshape(2, n, num_blocks * lanes)

    param = jnp.zeros((n + 8, d + 1), jnp.float32)
    param = param.at[:n, :d].set(P).at[:n, d].set(deg_vec).at[n, :d].set(W_d)

    kernel = functools.partial(_nape_kernel, b=b)
    out = pl.pallas_call(
        kernel,
        out_shape=jax.ShapeDtypeStruct((num_blocks, 8, 128), jnp.float32),
        grid_spec=pltpu.PrefetchScalarGridSpec(
            num_scalar_prefetch=0,
            grid=(num_blocks,),
            in_specs=[
                pl.BlockSpec((n + 8, d + 1), lambda i: (0, 0)),       # shared P/W_d/deg
                pl.BlockSpec((d, lanes), lambda i: (0, i)),           # selected rows^T
                pl.BlockSpec((2, n, lanes), lambda i: (0, 0, i)),     # coefficients
            ],
            out_specs=pl.BlockSpec((None, 8, 128), lambda i: (i, 0, 0)),
        ),
        compiler_params=pltpu.CompilerParams(
            dimension_semantics=("parallel",)),
    )(param, psel_t, coef)

    l_adj = out[:, 0, :s_blk].reshape(-1)[:s_calls]
    l_dd = out[:, 1, :s_blk].reshape(-1)[:s_calls]
    l_deg = out[:, 2, :s_blk].reshape(-1)[:s_calls]
    return l_adj, l_dd, l_deg


def position_encode_forward(P, W_d, deg_vec, selected_nodes, pos_neigh, neg_samples,
                            deg_pos_neigh, deg_neg_samples):
    """Equivalent of Position_encode.forward(selected_nodes, test=False):
    returns (L_adj, L_deg_dist, L_deg) as scalars."""
    la, ld, lg = position_encode_forward_batched(
        P, W_d, deg_vec,
        jnp.asarray(selected_nodes)[None], jnp.asarray(pos_neigh)[None], neg_samples,
        jnp.asarray(deg_pos_neigh)[None], deg_neg_samples)
    return la[0], ld[0], lg[0]


# --------------------------- pure numpy reference ---------------------------
def ref_forward(P, W_d, deg_vec, nodes, pos_neigh, neg_samples,
                deg_pos_neigh, deg_neg_samples):
    P = np.asarray(P, np.float64)
    W_d = np.asarray(W_d, np.float64)
    deg_vec = np.asarray(deg_vec, np.float64)
    Z = 2.0 / (1.0 + np.exp(-P)) - 1.0        # assumed Sigmoid_alt

    deg_prime = Z @ W_d
    L_deg = np.mean((deg_prime - deg_vec) ** 2)

    def hamming(zi, zp):
        return np.abs(zi - zp).sum(-1)

    def logsig(x):
        return np.log(1.0 / (1.0 + np.exp(-x)))

    def softmax_approx(i, pos, neg):
        sum_neg = logsig(hamming(Z[i], Z[neg])).sum()
        log_pos = logsig(hamming(Z[i], Z[pos]))
        sum_of_logs = (log_pos - sum_neg).sum()
        return -sum_of_logs / float(len(set(pos.tolist())))

    L_adj, L_dd = 0.0, 0.0
    for bi, i in enumerate(nodes):
        L_adj += softmax_approx(int(i), np.asarray(pos_neigh[bi]), np.asarray(neg_samples))
        L_dd += softmax_approx(int(i), np.asarray(deg_pos_neigh[bi]),
                               np.asarray(deg_neg_samples))
    return float(L_adj), float(L_dd), float(L_deg)


if __name__ == "__main__":
    N, D, B = 16, 8, 4
    K_POS, K_NEG, K_DPOS, K_DNEG = 3, 5, 3, 4

    key = jax.random.PRNGKey(0)
    kP, kW, kdeg = jax.random.split(key, 3)
    P = jax.random.normal(kP, (N, D), jnp.float32)           # self.P
    W_d = jax.random.normal(kW, (D,), jnp.float32)           # self.W_d
    deg_vec = jax.random.uniform(kdeg, (N,), jnp.float32, 1.0, 5.0)   # synthetic degrees

    rng = np.random.RandomState(0)
    neg_samples = rng.choice(N, K_NEG, replace=False).astype(np.int32)
    deg_neg_samples = rng.choice(N, K_DNEG, replace=False).astype(np.int32)

    # ---- single forward call (matches module semantics) ----
    nodes = np.array([1, 4, 7, 10], np.int32)                # selected_nodes
    pos_neigh = np.stack([rng.choice(N, K_POS, replace=False) for _ in range(B)]).astype(np.int32)
    deg_pos_neigh = np.stack([rng.choice(N, K_DPOS, replace=False) for _ in range(B)]).astype(np.int32)

    outs = position_encode_forward(P, W_d, deg_vec, jnp.asarray(nodes),
                                   jnp.asarray(pos_neigh), jnp.asarray(neg_samples),
                                   jnp.asarray(deg_pos_neigh), jnp.asarray(deg_neg_samples))
    outs = jax.block_until_ready(outs)
    ref = ref_forward(np.asarray(P), np.asarray(W_d), np.asarray(deg_vec),
                      nodes, pos_neigh, neg_samples, deg_pos_neigh, deg_neg_samples)
    np.testing.assert_allclose(np.array([float(o) for o in outs], np.float64),
                               np.array(ref, np.float64), rtol=2e-4, atol=2e-4)

    # ---- batched: S forward calls, S_BLK=32 per grid step (2 grid steps + padding) ----
    S = 37
    nodes_s = np.stack([rng.choice(N, B, replace=False) for _ in range(S)]).astype(np.int32)
    pos_s = np.stack([[rng.choice(N, K_POS, replace=False) for _ in range(B)]
                      for _ in range(S)]).astype(np.int32)
    dpos_s = np.stack([[rng.choice(N, K_DPOS, replace=False) for _ in range(B)]
                       for _ in range(S)]).astype(np.int32)
    pos_s[1, 0, 1] = pos_s[1, 0, 0]      # force a duplicate positive -> exercises len(set(pos))

    la, ld, lg = jax.block_until_ready(position_encode_forward_batched(
        P, W_d, deg_vec, jnp.asarray(nodes_s), jnp.asarray(pos_s),
        jnp.asarray(neg_samples), jnp.asarray(dpos_s), jnp.asarray(deg_neg_samples)))
    for si in range(S):
        ref_s = ref_forward(np.asarray(P), np.asarray(W_d), np.asarray(deg_vec),
                            nodes_s[si], pos_s[si], neg_samples, dpos_s[si], deg_neg_samples)
        np.testing.assert_allclose(
            np.array([float(la[si]), float(ld[si]), float(lg[si])], np.float64),
            np.array(ref_s, np.float64), rtol=2e-4, atol=2e-4)

    print("KERNEL_OK")
</pallas_src>

<mosaic_0001>
module attributes {stable_mosaic.version = 11 : i64} {
  func.func @_nape_kernel(%arg0: i32, %arg1: memref<24x9xf32, #tpu.memory_space<vmem>>, %arg2: memref<8x128xf32, #tpu.memory_space<vmem>>, %arg3: memref<2x16x128xf32, #tpu.memory_space<vmem>>, %arg4: memref<1x8x128xf32, #tpu.memory_space<vmem>>) attributes {dimension_semantics = [#tpu.dimension_semantics<parallel>], iteration_bounds = array<i64: 1>, scalar_prefetch = 0 : i64, scratch_operands = 0 : i64, tpu.core_type = #tpu.core_type<tc>, window_params = [{pipeline_mode = #tpu.pipeline_mode<synchronous>, transform_indices = @transform_0, window_bounds = array<i64: 24, 9>}, {transform_indices = @transform_1, window_bounds = array<i64: 8, 128>}, {transform_indices = @transform_2, window_bounds = array<i64: 2, 16, 128>}, {transform_indices = @transform_3, window_bounds = array<i64: 1, 8, 128>}]} {
    %c0 = arith.constant 0 : index
    %c0_0 = arith.constant 0 : index
    %0 = vector.load %arg1[%c0, %c0_0] : memref<24x9xf32, #tpu.memory_space<vmem>>, vector<24x9xf32>
    %1 = vector.extract_strided_slice %0 {offsets = [0, 0], sizes = [16, 8], strides = [1, 1]} : vector<24x9xf32> to vector<16x8xf32>
    %cst = arith.constant 5.000000e-01 : f32
    %2 = vector.broadcast %cst : f32 to vector<16x8xf32>
    %3 = arith.mulf %2, %1 : vector<16x8xf32>
    %4 = math.tanh %3 : vector<16x8xf32>
    %c0_1 = arith.constant 0 : index
    %c0_2 = arith.constant 0 : index
    %5 = vector.load %arg2[%c0_1, %c0_2] : memref<8x128xf32, #tpu.memory_space<vmem>>, vector<8x128xf32>
    %cst_3 = arith.constant 5.000000e-01 : f32
    %6 = vector.broadcast %cst_3 : f32 to vector<8x128xf32>
    %7 = arith.mulf %6, %5 : vector<8x128xf32>
    %8 = math.tanh %7 : vector<8x128xf32>
    %9 = vector.extract_strided_slice %0 {offsets = [0, 8], sizes = [16, 1], strides = [1, 1]} : vector<24x9xf32> to vector<16x1xf32>
    %10 = vector.extract_strided_slice %0 {offsets = [16, 0], sizes = [1, 8], strides = [1, 1]} : vector<24x9xf32> to vector<1x8xf32>
    %11 = vector.broadcast %10 : vector<1x8xf32> to vector<16x8xf32>
    %12 = arith.mulf %4, %11 : vector<16x8xf32>
    %cst_4 = arith.constant dense<0.000000e+00> : vector<16xf32>
    %13 = vector.multi_reduction <add>, %12, %cst_4 [1] : vector<16x8xf32> to vector<16xf32>
    %14 = vector.shape_cast %13 : vector<16xf32> to vector<16x1xf32>
    %15 = arith.subf %14, %9 : vector<16x1xf32>
    %16 = arith.mulf %15, %15 : vector<16x1xf32>
    %cst_5 = arith.constant dense<0.000000e+00> : vector<16xf32>
    %17 = vector.multi_reduction <add>, %16, %cst_5 [1] : vector<16x1xf32> to vector<16xf32>
    %18 = vector.shape_cast %17 : vector<16xf32> to vector<16x1xf32>
    %cst_6 = arith.constant dense<0.000000e+00> : vector<1xf32>
    %19 = vector.multi_reduction <add>, %18, %cst_6 [0] : vector<16x1xf32> to vector<1xf32>
    %20 = vector.shape_cast %19 : vector<1xf32> to vector<1x1xf32>
    %cst_7 = arith.constant 6.250000e-02 : f32
    %21 = vector.broadcast %cst_7 : f32 to vector<1x1xf32>
    %22 = arith.mulf %20, %21 : vector<1x1xf32>
    %cst_8 = arith.constant 0.000000e+00 : f32
    %23 = vector.broadcast %cst_8 : f32 to vector<16x128xf32>
    %24 = vector.extract_strided_slice %4 {offsets = [0, 0], sizes = [16, 1], strides = [1, 1]} : vector<16x8xf32> to vector<16x1xf32>
    %25 = vector.extract_strided_slice %8 {offsets = [0, 0], sizes = [1, 128], strides = [1, 1]} : vector<8x128xf32> to vector<1x128xf32>
    %26 = vector.broadcast %24 : vector<16x1xf32> to vector<16x128xf32>
    %27 = vector.broadcast %25 : vector<1x128xf32> to vector<16x128xf32>
    %28 = arith.subf %26, %27 : vector<16x128xf32>
    %29 = math.absf %28 : vector<16x128xf32>
    %30 = arith.addf %23, %29 : vector<16x128xf32>
    %31 = vector.extract_strided_slice %4 {offsets = [0, 1], sizes = [16, 1], strides = [1, 1]} : vector<16x8xf32> to vector<16x1xf32>
    %32 = vector.extract_strided_slice %8 {offsets = [1, 0], sizes = [1, 128], strides = [1, 1]} : vector<8x128xf32> to vector<1x128xf32>
    %33 = vector.broadcast %31 : vector<16x1xf32> to vector<16x128xf32>
    %34 = vector.broadcast %32 : vector<1x128xf32> to vector<16x128xf32>
    %35 = arith.subf %33, %34 : vector<16x128xf32>
    %36 = math.absf %35 : vector<16x128xf32>
    %37 = arith.addf %30, %36 : vector<16x128xf32>
    %38 = vector.extract_strided_slice %4 {offsets = [0, 2], sizes = [16, 1], strides = [1, 1]} : vector<16x8xf32> to vector<16x1xf32>
    %39 = vector.extract_strided_slice %8 {offsets = [2, 0], sizes = [1, 128], strides = [1, 1]} : vector<8x128xf32> to vector<1x128xf32>
    %40 = vector.broadcast %38 : vector<16x1xf32> to vector<16x128xf32>
    %41 = vector.broadcast %39 : vector<1x128xf32> to vector<16x128xf32>
    %42 = arith.subf %40, %41 : vector<16x128xf32>
    %43 = math.absf %42 : vector<16x128xf32>
    %44 = arith.addf %37, %43 : vector<16x128xf32>
    %45 = vector.extract_strided_slice %4 {offsets = [0, 3], sizes = [16, 1], strides = [1, 1]} : vector<16x8xf32> to vector<16x1xf32>
    %46 = vector.extract_strided_slice %8 {offsets = [3, 0], sizes = [1, 128], strides = [1, 1]} : vector<8x128xf32> to vector<1x128xf32>
    %47 = vector.broadcast %45 : vector<16x1xf32> to vector<16x128xf32>
    %48 = vector.broadcast %46 : vector<1x128xf32> to vector<16x128xf32>
    %49 = arith.subf %47, %48 : vector<16x128xf32>
    %50 = math.absf %49 : vector<16x128xf32>
    %51 = arith.addf %44, %50 : vector<16x128xf32>
    %52 = vector.extract_strided_slice %4 {offsets = [0, 4], sizes = [16, 1], strides = [1, 1]} : vector<16x8xf32> to vector<16x1xf32>
    %53 = vector.extract_strided_slice %8 {offsets = [4, 0], sizes = [1, 128], strides = [1, 1]} : vector<8x128xf32> to vector<1x128xf32>
    %54 = vector.broadcast %52 : vector<16x1xf32> to vector<16x128xf32>
    %55 = vector.broadcast %53 : vector<1x128xf32> to vector<16x128xf32>
    %56 = arith.subf %54, %55 : vector<16x128xf32>
    %57 = math.absf %56 : vector<16x128xf32>
    %58 = arith.addf %51, %57 : vector<16x128xf32>
    %59 = vector.extract_strided_slice %4 {offsets = [0, 5], sizes = [16, 1], strides = [1, 1]} : vector<16x8xf32> to vector<16x1xf32>
    %60 = vector.extract_strided_slice %8 {offsets = [5, 0], sizes = [1, 128], strides = [1, 1]} : vector<8x128xf32> to vector<1x128xf32>
    %61 = vector.broadcast %59 : vector<16x1xf32> to vector<16x128xf32>
    %62 = vector.broadcast %60 : vector<1x128xf32> to vector<16x128xf32>
    %63 = arith.subf %61, %62 : vector<16x128xf32>
    %64 = math.absf %63 : vector<16x128xf32>
    %65 = arith.addf %58, %64 : vector<16x128xf32>
    %66 = vector.extract_strided_slice %4 {offsets = [0, 6], sizes = [16, 1], strides = [1, 1]} : vector<16x8xf32> to vector<16x1xf32>
    %67 = vector.extract_strided_slice %8 {offsets = [6, 0], sizes = [1, 128], strides = [1, 1]} : vector<8x128xf32> to vector<1x128xf32>
    %68 = vector.broadcast %66 : vector<16x1xf32> to vector<16x128xf32>
    %69 = vector.broadcast %67 : vector<1x128xf32> to vector<16x128xf32>
    %70 = arith.subf %68, %69 : vector<16x128xf32>
    %71 = math.absf %70 : vector<16x128xf32>
    %72 = arith.addf %65, %71 : vector<16x128xf32>
    %73 = vector.extract_strided_slice %4 {offsets = [0, 7], sizes = [16, 1], strides = [1, 1]} : vector<16x8xf32> to vector<16x1xf32>
    %74 = vector.extract_strided_slice %8 {offsets = [7, 0], sizes = [1, 128], strides = [1, 1]} : vector<8x128xf32> to vector<1x128xf32>
    %75 = vector.broadcast %73 : vector<16x1xf32> to vector<16x128xf32>
    %76 = vector.broadcast %74 : vector<1x128xf32> to vector<16x128xf32>
    %77 = arith.subf %75, %76 : vector<16x128xf32>
    %78 = math.absf %77 : vector<16x128xf32>
    %79 = arith.addf %72, %78 : vector<16x128xf32>
    %cst_9 = arith.constant 0.000000e+00 : f32
    %80 = vector.broadcast %cst_9 : f32 to vector<16x128xf32>
    %81 = arith.subf %80, %79 : vector<16x128xf32>
    %82 = math.exp %81 : vector<16x128xf32>
    %cst_10 = arith.constant 1.000000e+00 : f32
    %83 = vector.broadcast %cst_10 : f32 to vector<16x128xf32>
    %84 = arith.addf %83, %82 : vector<16x128xf32>
    %85 = math.log %84 : vector<16x128xf32>
    %cst_11 = arith.constant 0.000000e+00 : f32
    %86 = vector.broadcast %cst_11 : f32 to vector<16x128xf32>
    %87 = arith.subf %86, %85 : vector<16x128xf32>
    %c0_12 = arith.constant 0 : index
    %c0_13 = arith.constant 0 : index
    %c0_14 = arith.constant 0 : index
    %88 = vector.load %arg3[%c0_12, %c0_13, %c0_14] : memref<2x16x128xf32, #tpu.memory_space<vmem>>, vector<2x16x128xf32>
    %89 = vector.extract_strided_slice %88 {offsets = [0, 0, 0], sizes = [1, 16, 128], strides = [1, 1, 1]} : vector<2x16x128xf32> to vector<1x16x128xf32>
    %90 = vector.shape_cast %89 : vector<1x16x128xf32> to vector<16x128xf32>
    %91 = arith.mulf %87, %90 : vector<16x128xf32>
    %cst_15 = arith.constant dense<0.000000e+00> : vector<128xf32>
    %92 = vector.multi_reduction <add>, %91, %cst_15 [0] : vector<16x128xf32> to vector<128xf32>
    %93 = vector.shape_cast %92 : vector<128xf32> to vector<1x128xf32>
    %94 = vector.extract_strided_slice %88 {offsets = [1, 0, 0], sizes = [1, 16, 128], strides = [1, 1, 1]} : vector<2x16x128xf32> to vector<1x16x128xf32>
    %95 = vector.shape_cast %94 : vector<1x16x128xf32> to vector<16x128xf32>
    %96 = arith.mulf %87, %95 : vector<16x128xf32>
    %cst_16 = arith.constant dense<0.000000e+00> : vector<128xf32>
    %97 = vector.multi_reduction <add>, %96, %cst_16 [0] : vector<16x128xf32> to vector<128xf32>
    %98 = vector.shape_cast %97 : vector<128xf32> to vector<1x128xf32>
    %c32_i32 = arith.constant 32 : i32
    %99 = tpu.dynamic_rotate %93 by %c32_i32 dim 1 : vector<1x128xf32>, i32 -> vector<1x128xf32>
    %100 = arith.addf %93, %99 : vector<1x128xf32>
    %c32_i32_17 = arith.constant 32 : i32
    %101 = tpu.dynamic_rotate %98 by %c32_i32_17 dim 1 : vector<1x128xf32>, i32 -> vector<1x128xf32>
    %102 = arith.addf %98, %101 : vector<1x128xf32>
    %c64_i32 = arith.constant 64 : i32
    %103 = tpu.dynamic_rotate %93 by %c64_i32 dim 1 : vector<1x128xf32>, i32 -> vector<1x128xf32>
    %104 = arith.addf %100, %103 : vector<1x128xf32>
    %c64_i32_18 = arith.constant 64 : i32
    %105 = tpu.dynamic_rotate %98 by %c64_i32_18 dim 1 : vector<1x128xf32>, i32 -> vector<1x128xf32>
    %106 = arith.addf %102, %105 : vector<1x128xf32>
    %c96_i32 = arith.constant 96 : i32
    %107 = tpu.dynamic_rotate %93 by %c96_i32 dim 1 : vector<1x128xf32>, i32 -> vector<1x128xf32>
    %108 = arith.addf %104, %107 : vector<1x128xf32>
    %c96_i32_19 = arith.constant 96 : i32
    %109 = tpu.dynamic_rotate %98 by %c96_i32_19 dim 1 : vector<1x128xf32>, i32 -> vector<1x128xf32>
    %110 = arith.addf %106, %109 : vector<1x128xf32>
    %111 = tpu.iota {dimensions = array<i32: 0>} : vector<8x128xi32>
    %112 = tpu.iota {dimensions = array<i32: 1>} : vector<8x128xi32>
    %c32_i32_20 = arith.constant 32 : i32
    %113 = vector.broadcast %c32_i32_20 : i32 to vector<8x128xi32>
    %114 = arith.cmpi slt, %112, %113 : vector<8x128xi32>
    %c0_i32 = arith.constant 0 : i32
    %115 = vector.broadcast %c0_i32 : i32 to vector<8x128xi32>
    %116 = arith.cmpi eq, %111, %115 : vector<8x128xi32>
    %117 = arith.andi %116, %114 : vector<8x128xi1>
    %cst_21 = arith.constant 0.000000e+00 : f32
    %118 = vector.shape_cast %108 : vector<1x128xf32> to vector<1x128xf32>
    %119 = vector.broadcast %118 : vector<1x128xf32> to vector<8x128xf32>
    %120 = vector.broadcast %cst_21 : f32 to vector<8x128xf32>
    %121 = arith.select %117, %119, %120 : vector<8x128xi1>, vector<8x128xf32>
    %c1_i32 = arith.constant 1 : i32
    %122 = vector.broadcast %c1_i32 : i32 to vector<8x128xi32>
    %123 = arith.cmpi eq, %111, %122 : vector<8x128xi32>
    %124 = arith.andi %123, %114 : vector<8x128xi1>
    %125 = vector.shape_cast %110 : vector<1x128xf32> to vector<1x128xf32>
    %126 = vector.broadcast %125 : vector<1x128xf32> to vector<8x128xf32>
    %127 = arith.select %124, %126, %121 : vector<8x128xi1>, vector<8x128xf32>
    %c2_i32 = arith.constant 2 : i32
    %128 = vector.broadcast %c2_i32 : i32 to vector<8x128xi32>
    %129 = arith.cmpi eq, %111, %128 : vector<8x128xi32>
    %130 = arith.andi %129, %114 : vector<8x128xi1>
    %131 = vector.shape_cast %22 : vector<1x1xf32> to vector<1x1xf32>
    %132 = vector.broadcast %131 : vector<1x1xf32> to vector<8x128xf32>
    %133 = arith.select %130, %132, %127 : vector<8x128xi1>, vector<8x128xf32>
    %c0_22 = arith.constant 0 : index
    %c0_23 = arith.constant 0 : index
    %c0_24 = arith.constant 0 : index
    %134 = vector.load %arg4[%c0_22, %c0_23, %c0_24] : memref<1x8x128xf32, #tpu.memory_space<vmem>>, vector<1x8x128xf32>
    %135 = vector.shape_cast %134 : vector<1x8x128xf32> to vector<8x128xf32>
    %136 = vector.shape_cast %133 : vector<8x128xf32> to vector<1x8x128xf32>
    tpu.vector_store %arg4[%c0_22, %c0_23, %c0_24], %136 {strides = array<i32>} : memref<1x8x128xf32, #tpu.memory_space<vmem>>, vector<1x8x128xf32>,
    return
  }
  func.func @transform_0(%arg0: i32) -> (i32, i32) {
    %c0_i32 = arith.constant 0 : i32
    %c0_i32_0 = arith.constant 0 : i32
    %c0_i32_1 = arith.constant 0 : i32
    return %c0_i32, %c0_i32_0 : i32, i32
  }
  func.func @transform_1(%arg0: i32) -> (i32, i32) {
    %c0_i32 = arith.constant 0 : i32
    %c0_i32_0 = arith.constant 0 : i32
    return %c0_i32, %arg0 : i32, i32
  }
  func.func @transform_2(%arg0: i32) -> (i32, i32, i32) {
    %c0_i32 = arith.constant 0 : i32
    %c0_i32_0 = arith.constant 0 : i32
    %c0_i32_1 = arith.constant 0 : i32
    return %c0_i32, %c0_i32_0, %arg0 : i32, i32, i32
  }
  func.func @transform_3(%arg0: i32) -> (i32, i32, i32) {
    %c0_i32 = arith.constant 0 : i32
    %c0_i32_0 = arith.constant 0 : i32
    %c0_i32_1 = arith.constant 0 : i32
    return %arg0, %c0_i32, %c0_i32_0 : i32, i32, i32
  }
}

</mosaic_0001>

<llo_original>
// kernel: position_encode_forward_batched.1
$region0: #{position_encode_forward_batched.1}
  #allocation0 [shape = 'u32[]', space=smem, size = 0x4, offset = 0x4, fixed_abs, tag = 'smem constant byte address 0x4 - core index']
  #allocation1 [shape = 'u32[144,128]{1,0:T(1,128)}', space=vmem, size = 0x12000, scoped, tag = 'internal scratch']
  %s0 = inlined_call_operand.vmem [shape: f32[24,9], index: 0, kind: input, shape index: {}]
  %s1 = inlined_call_operand.vmem [shape: f32[8,128], index: 1, kind: input, shape index: {}]
  %s2 = inlined_call_operand.vmem [shape: f32[2,16,128], index: 2, kind: input, shape index: {}]
  %s3 = inlined_call_operand.vmem [shape: f32[1,8,128], index: 3, kind: output, shape index: {}]
  %s4 = sld [smem:[#allocation0]]
  $region22: #{position_encode_forward_batched.1} parent=0
    _
  %s6 = ssub.s32 1, %s4
  %s7 = scalar_select 0, %s6, %s4
  // Predicated region
  $region2: #{position_encode_forward_batched.1} parent=0 // pred_check
    _
  $region3: #{position_encode_forward_batched.1} parent=0 // pred_check_branch
    %9 = sbr.rel (0) target = $region5
  $region4: #{position_encode_forward_batched.1} parent=0 // pred_region
    _
  $region5: #{position_encode_forward_batched.1} parent=0 // pred_fallthru
    _
  // Predicated region
  $region6: #{position_encode_forward_batched.1} parent=0 // pred_check
    _
  $region7: #{position_encode_forward_batched.1} parent=0 // pred_check_branch
    %11 = sbr.rel (0) target = $region9
  $region8: #{position_encode_forward_batched.1} parent=0 // pred_region
    _
  $region9: #{position_encode_forward_batched.1} parent=0 // pred_fallthru
    _
  // Predicated region
  $region10: #{position_encode_forward_batched.1} parent=0 // pred_check
    _
  $region11: #{position_encode_forward_batched.1} parent=0 // pred_check_branch
    %13 = sbr.rel (0) target = $region13
  $region12: #{position_encode_forward_batched.1} parent=0 // pred_region
    _
  $region13: #{position_encode_forward_batched.1} parent=0 // pred_fallthru
    _
  %v14 = vld [vmem:[%s0] sm:$0xff]
  %v15 = vld [vmem:[%s0 + $0x8] sm:$0xff]
  %v16 = vld [vmem:[%s0 + $0x10] sm:$0xff]
  %v17 = vmul.f32 %v14, 0.5
  %v18 = vmul.f32 %v15, 0.5
  %v19 = vtanh.pop %v17
  %v20 = vtanh.pop %v18
  %v21 = vld [vmem:[%s1] sm:$0xff]
  %v22 = vmul.f32 %v21, 0.5
  %v23 = vtanh.pop %v22
  %v24 = vlaneseq
  %v25 = vshrl.u32 %v24, 7
  %v26 = vsub.s32 0, %v25
  %v27 = vrot.slane %v16, %v26
  %v28 = vmul.f32 %v19, %v27
  %v29 = vmul.f32 %v20, %v27
  %vm30 = vcmask 64512
  %v31 = vsel %vm30, %v28, 0.0
  %32 = vadd.xlane.f32.xlu0 %v31
  %v33 = vpop.xlane.xlu0 %32
  %v34 = vsel %vm30, %v29, 0.0
  %35 = vadd.xlane.f32.xlu0 %v34
  %v36 = vpop.xlane.xlu0 %35
  %v37 = vsub.f32 %v33, %v14
  %v38 = vsub.f32 %v36, %v15
  %v39 = vmul.f32 %v37, %v37
  %v40 = vmul.f32 %v38, %v38
  %v41 = vadd.f32 %v39, 0.0
  %v42 = vadd.f32 %v40, 0.0
  %vm43 = vcmask 72768
  %v44 = vsel %vm43, %v41, 0.0
  %v45 = vsel %vm43, %v42, 0.0
  %v46 = vadd.f32 %v44, %v45
  %v47 = vrot.slane %v46, 4
  %v48 = vadd.f32 %v46, %v47
  %v49 = vrot.slane %v48, 2
  %v50 = vadd.f32 %v48, %v49
  %v51 = vrot.slane %v50, 1
  %v52 = vadd.f32 %v50, %v51
  %v53 = vmul.f32 %v52, 0.0625
  %55 = vset.pattern.permute.xlu0 0
  %56 = vperm.xlu0 %55, %v19
  %v57 = vpop.permute.xlu0 %56
  %60 = vset.pattern.permute.xlu0 0
  %61 = vperm.xlu0 %60, %v20
  %v62 = vpop.permute.xlu0 %61
  %v64 = vlaneseq
  %v65 = vshrl.u32 %v64, 7
  %v66 = vsub.s32 0, %v65
  %v67 = vrot.slane %v23, %v66
  %v68 = vsub.f32 %v57, %v67
  %v69 = vsub.f32 %v62, %v67
  %v70 = vand.u32 2147483647, %v68
  %v71 = vand.u32 2147483647, %v69
  %v72 = vadd.f32 %v70, 0.0
  %v73 = vadd.f32 %v71, 0.0
  %74 = vset.pattern.permute.xlu0 1
  %75 = vperm.xlu0 %74, %v19
  %v76 = vpop.permute.xlu0 %75
  %78 = vset.pattern.permute.xlu0 1
  %79 = vperm.xlu0 %78, %v20
  %v80 = vpop.permute.xlu0 %79
  %v82 = vlaneseq
  %v83 = vshrl.u32 %v82, 7
  %v84 = vsub.s32 1, %v83
  %v85 = vrot.slane %v23, %v84
  %v86 = vsub.f32 %v76, %v85
  %v87 = vsub.f32 %v80, %v85
  %v88 = vand.u32 2147483647, %v86
  %v89 = vand.u32 2147483647, %v87
  %v90 = vadd.f32 %v72, %v88
  %v91 = vadd.f32 %v73, %v89
  %92 = vset.pattern.permute.xlu0 2
  %93 = vperm.xlu0 %92, %v19
  %v94 = vpop.permute.xlu0 %93
  %96 = vset.pattern.permute.xlu0 2
  %97 = vperm.xlu0 %96, %v20
  %v98 = vpop.permute.xlu0 %97
  %v100 = vlaneseq
  %v101 = vshrl.u32 %v100, 7
  %v102 = vsub.s32 2, %v101
  %v103 = vrot.slane %v23, %v102
  %v104 = vsub.f32 %v94, %v103
  %v105 = vsub.f32 %v98, %v103
  %v106 = vand.u32 2147483647, %v104
  %v107 = vand.u32 2147483647, %v105
  %v108 = vadd.f32 %v90, %v106
  %v109 = vadd.f32 %v91, %v107
  %110 = vset.pattern.permute.xlu0 3
  %111 = vperm.xlu0 %110, %v19
  %v112 = vpop.permute.xlu0 %111
  %114 = vset.pattern.permute.xlu0 3
  %115 = vperm.xlu0 %114, %v20
  %v116 = vpop.permute.xlu0 %115
  %v118 = vlaneseq
  %v119 = vshrl.u32 %v118, 7
  %v120 = vsub.s32 3, %v119
  %v121 = vrot.slane %v23, %v120
  %v122 = vsub.f32 %v112, %v121
  %v123 = vsub.f32 %v116, %v121
  %v124 = vand.u32 2147483647, %v122
  %v125 = vand.u32 2147483647, %v123
  %v126 = vadd.f32 %v108, %v124
  %v127 = vadd.f32 %v109, %v125
  %128 = vset.pattern.permute.xlu0 4
  %129 = vperm.xlu0 %128, %v19
  %v130 = vpop.permute.xlu0 %129
  %132 = vset.pattern.permute.xlu0 4
  %133 = vperm.xlu0 %132, %v20
  %v134 = vpop.permute.xlu0 %133
  %v136 = vlaneseq
  %v137 = vshrl.u32 %v136, 7
  %v138 = vsub.s32 4, %v137
  %v139 = vrot.slane %v23, %v138
  %v140 = vsub.f32 %v130, %v139
  %v141 = vsub.f32 %v134, %v139
  %v142 = vand.u32 2147483647, %v140
  %v143 = vand.u32 2147483647, %v141
  %v144 = vadd.f32 %v126, %v142
  %v145 = vadd.f32 %v127, %v143
  %146 = vset.pattern.permute.xlu0 5
  %147 = vperm.xlu0 %146, %v19
  %v148 = vpop.permute.xlu0 %147
  %150 = vset.pattern.permute.xlu0 5
  %151 = vperm.xlu0 %150, %v20
  %v152 = vpop.permute.xlu0 %151
  %v154 = vlaneseq
  %v155 = vshrl.u32 %v154, 7
  %v156 = vsub.s32 5, %v155
  %v157 = vrot.slane %v23, %v156
  %v158 = vsub.f32 %v148, %v157
  %v159 = vsub.f32 %v152, %v157
  %v160 = vand.u32 2147483647, %v158
  %v161 = vand.u32 2147483647, %v159
  %v162 = vadd.f32 %v144, %v160
  %v163 = vadd.f32 %v145, %v161
  %164 = vset.pattern.permute.xlu0 6
  %165 = vperm.xlu0 %164, %v19
  %v166 = vpop.permute.xlu0 %165
  %168 = vset.pattern.permute.xlu0 6
  %169 = vperm.xlu0 %168, %v20
  %v170 = vpop.permute.xlu0 %169
  %v172 = vlaneseq
  %v173 = vshrl.u32 %v172, 7
  %v174 = vsub.s32 6, %v173
  %v175 = vrot.slane %v23, %v174
  %v176 = vsub.f32 %v166, %v175
  %v177 = vsub.f32 %v170, %v175
  %v178 = vand.u32 2147483647, %v176
  %v179 = vand.u32 2147483647, %v177
  %v180 = vadd.f32 %v162, %v178
  %v181 = vadd.f32 %v163, %v179
  %182 = vset.pattern.permute.xlu0 7
  %183 = vperm.xlu0 %182, %v19
  %v184 = vpop.permute.xlu0 %183
  %186 = vset.pattern.permute.xlu0 7
  %187 = vperm.xlu0 %186, %v20
  %v188 = vpop.permute.xlu0 %187
  %v190 = vlaneseq
  %v191 = vshrl.u32 %v190, 7
  %v192 = vsub.s32 7, %v191
  %v193 = vrot.slane %v23, %v192
  %v194 = vsub.f32 %v184, %v193
  %v195 = vsub.f32 %v188, %v193
  %v196 = vand.u32 2147483647, %v194
  %v197 = vand.u32 2147483647, %v195
  %v198 = vadd.f32 %v180, %v196
  %v199 = vadd.f32 %v181, %v197
  %v200 = vsub.f32 0.0, %v198
  %v201 = vsub.f32 0.0, %v199
  %v202 = vmul.f32 %v200, 1.442695
  %v203 = vpow.pop %v202
  %v204 = vmul.f32 %v201, 1.442695
  %v205 = vpow.pop %v204
  %v206 = vadd.f32 %v203, 1.0
  %v207 = vadd.f32 %v205, 1.0
  %v208 = vlog2.pop %v206
  %v209 = vmul.f32 %v208, 0.6931472
  %v210 = vlog2.pop %v207
  %v211 = vmul.f32 %v210, 0.6931472
  %v212 = vsub.f32 0.0, %v209
  %v213 = vsub.f32 0.0, %v211
  %v214 = vld [vmem:[%s2] sm:$0xff]
  %v215 = vld [vmem:[%s2 + $0x8] sm:$0xff]
  %v216 = vld [vmem:[%s2 + $0x10] sm:$0xff]
  %v217 = vld [vmem:[%s2 + $0x18] sm:$0xff]
  %v218 = vmul.f32 %v212, %v214
  %v219 = vmul.f32 %v213, %v215
  %v220 = vadd.f32 %v218, %v219
  %v221 = vrot.slane %v220, 4
  %v222 = vadd.f32 %v220, %v221
  %v223 = vrot.slane %v222, 2
  %v224 = vadd.f32 %v222, %v223
  %v225 = vrot.slane %v224, 1
  %v226 = vadd.f32 %v224, %v225
  %v227 = vmul.f32 %v212, %v216
  %v228 = vmul.f32 %v213, %v217
  %v229 = vadd.f32 %v227, %v228
  %v230 = vrot.slane %v229, 4
  %v231 = vadd.f32 %v229, %v230
  %v232 = vrot.slane %v231, 2
  %v233 = vadd.f32 %v231, %v232
  %v234 = vrot.slane %v233, 1
  %v235 = vadd.f32 %v233, %v234
  %236 = vrot.lane.b32.xlu0 %v226, 32
  %v237 = vpop.permute.xlu0 %236
  %v238 = vadd.f32 %v226, %v237
  %239 = vrot.lane.b32.xlu0 %v235, 32
  %v240 = vpop.permute.xlu0 %239
  %v241 = vadd.f32 %v235, %v240
  %242 = vrot.lane.b32.xlu0 %v226, 64
  %v243 = vpop.permute.xlu0 %242
  %v244 = vadd.f32 %v238, %v243
  %245 = vrot.lane.b32.xlu0 %v235, 64
  %v246 = vpop.permute.xlu0 %245
  %v247 = vadd.f32 %v241, %v246
  %248 = vrot.lane.b32.xlu0 %v226, 96
  %v249 = vpop.permute.xlu0 %248
  %v250 = vadd.f32 %v244, %v249
  %251 = vrot.lane.b32.xlu0 %v235, 96
  %v252 = vpop.permute.xlu0 %251
  %v253 = vadd.f32 %v247, %v252
  %v254 = vlaneseq
  %v255 = vshrl.u32 %v254, 7
  %v256 = vlaneseq
  %v257 = vand.u32 %v256, 127
  %vm258 = vcmp.lt.s32.totalorder %v257, 32
  %vm259 = vcmp.eq.s32.totalorder %v255, 0
  %vm260 = vmand %vm259, %vm258
  %v261 = vlaneseq
  %v262 = vshrl.u32 %v261, 7
  %v263 = vsub.s32 0, %v262
  %v264 = vrot.slane %v250, %v263
  %v265 = vsel %vm260, %v264, 0.0
  %vm266 = vcmp.eq.s32.totalorder %v255, 1
  %vm267 = vmand %vm266, %vm258
  %v268 = vlaneseq
  %v269 = vshrl.u32 %v268, 7
  %v270 = vsub.s32 0, %v269
  %v271 = vrot.slane %v253, %v270
  %v272 = vsel %vm267, %v271, %v265
  %vm273 = vcmp.eq.s32.totalorder %v255, 2
  %vm274 = vmand %vm273, %vm258
  %276 = vset.pattern.permute.xlu0 8
  %277 = vperm.xlu0 %276, %v53
  %v278 = vpop.permute.xlu0 %277
  %v280 = vsel %vm274, %v278, %v272
  %281 = vst [vmem:[%s3] sm:$0xff] %v280
  // Predicated region
  $region14: #{position_encode_forward_batched.1} parent=0 // pred_check
    _
  $region15: #{position_encode_forward_batched.1} parent=0 // pred_check_branch
    %283 = sbr.rel (0) target = $region17
  $region16: #{position_encode_forward_batched.1} parent=0 // pred_region
    _
  $region17: #{position_encode_forward_batched.1} parent=0 // pred_fallthru
    _
  // Predicated region
  $region18: #{position_encode_forward_batched.1} parent=0 // pred_check
    _
  $region19: #{position_encode_forward_batched.1} parent=0 // pred_check_branch
    %285 = sbr.rel (0) target = $region21
  $region20: #{position_encode_forward_batched.1} parent=0 // pred_region
    _
  $region21: #{position_encode_forward_batched.1} parent=0 // pred_fallthru
    _

</llo_original>
